<compile_context>
chip_gen: v7x
topology: tpu7x:2x2x1
jax: 0.10.0
libtpu: 0.0.40
codegen_flags: <defaults>
</compile_context>

<pallas_src>
import functools

import jax
import jax.numpy as jnp
from jax.experimental import pallas as pl
from jax.experimental.pallas import tpu as pltpu


def _round_up(x: int, m: int) -> int:
    return (x + m - 1) // m * m


def _vmem_capacity_bytes() -> int:
    """Per-core VMEM capacity; conservative fallback if the query fails."""
    try:
        cap = int(getattr(pltpu.get_tpu_info(), "vmem_capacity_bytes", 0))
        if cap > 0:
            return cap
    except Exception:
        pass
    return 64 * 1024 * 1024          # v7x per-core VMEM (smallest of the three)


def _patch_expand_kernel(x_ref, wt_ref, seg_ref, segt_ref, beta_ref, o_ref, *,
                         eps: float):
    # x_ref    : (1, C_in, TN)      token tile (channels on sublanes, tokens on lanes)
    # wt_ref   : (4*out_dim, C_in)  expand weight in PyTorch layout, compute dtype
    # seg_ref  : (4, 4*out_dim)     f32 per-chunk mean reducer (entries = 1/out_dim)
    # segt_ref : (4*out_dim, 4)     f32 chunk broadcaster with gamma folded in
    # beta_ref : (4*out_dim, 1)     f32 LayerNorm shift (per output channel)
    # o_ref    : (1, 4*out_dim, TN) projected + normalized tokens (compute dtype)
    x = x_ref[0].astype(wt_ref.dtype)            # cast to MXU dtype inside VMEM
    y = jnp.dot(wt_ref[...], x, preferred_element_type=jnp.float32)   # (4od, TN) f32

    # Segmented LayerNorm statistics: one mean / mean-of-squares per token
    # column and per out_dim-sized chunk, computed with tiny constant matmuls
    # so they stay on the MXU (no lane slicing, no concatenate).
    mean = jnp.dot(seg_ref[...], y, preferred_element_type=jnp.float32)       # (4, TN)
    msq = jnp.dot(seg_ref[...], y * y, preferred_element_type=jnp.float32)    # (4, TN)
    inv = jax.lax.rsqrt(jnp.maximum(msq - mean * mean, 0.0) + eps)            # (4, TN)

    # Broadcast the per-chunk stats back to full width (gamma already folded
    # into segt_ref rows), then apply the whole LayerNorm as one fused FMA and
    # a single lane-dense store.
    scale = jnp.dot(segt_ref[...], inv, preferred_element_type=jnp.float32)   # (4od, TN)
    shift = beta_ref[...] - jnp.dot(segt_ref[...], mean * inv,
                                    preferred_element_type=jnp.float32)
    o_ref[0] = (y * scale + shift).astype(o_ref.dtype)


def patch_expand(x, w, gamma, beta, *, eps: float = 1e-5, tn: int | None = None,
                 compute_dtype=jnp.bfloat16, out_dtype=None):
    """x: (B, in_chan, H, W) NCHW  ->  (B, out_dim, 2H, 2W) NCHW.

    w     : (in_chan, 4*out_dim)   transposed nn.Linear weight (x @ w layout);
            the kernel actually consumes w.T, i.e. PyTorch's native
            (4*out_dim, in_chan) weight could be passed with no transpose.
    gamma : (out_dim,)  LayerNorm scale;  beta: (out_dim,)  LayerNorm shift.
    """
    B, C_in, H, W_sp = x.shape
    assert w.shape[0] == C_in and w.shape[1] % 4 == 0
    four_out = w.shape[1]
    out_dim = four_out // 4
    out_dtype = x.dtype if out_dtype is None else out_dtype
    cdt = jnp.dtype(compute_dtype)
    HW = H * W_sp

    # ---- tiny one-time parameter staging -------------------------------------
    wt = jnp.transpose(w).astype(cdt)                         # (4*out_dim, C_in)
    chunk = jnp.arange(four_out) // out_dim                   # row -> (p1,p2) chunk id
    onehot = (chunk[:, None] == jnp.arange(4)[None, :]).astype(jnp.float32)
    seg = onehot.T / float(out_dim)                           # (4, 4od): mean reducer
    gamma_full = jnp.tile(gamma.astype(jnp.float32), 4)       # gamma[r % out_dim]
    segt_g = onehot * gamma_full[:, None]                     # (4od, 4): gamma-folded
    beta_col = jnp.tile(beta.astype(jnp.float32), 4).reshape(four_out, 1)

    # ---- free layout view: NCHW -> (B, C_in, H*W); no transpose, no cast -----
    x_r = x.reshape(B, C_in, HW)

    # ---- per-generation VMEM budget with honest per-column accounting --------
    phys = _vmem_capacity_bytes()
    budget = min(3 * phys // 8, 64 * 1024 * 1024)     # ~24 MiB v7x, ~48 MiB v5e/v6e
    x_item = jnp.dtype(x.dtype).itemsize
    c_item = cdt.itemsize
    fixed = 2 * four_out * C_in * c_item                           # dbl-buffered weight
    fixed += 2 * (four_out * 4 + 4 * four_out * 4 + four_out * 4 * 4)  # beta/seg/segT f32
    fixed += 1 << 20                                               # Mosaic scratch headroom
    per_col = (2 * C_in * x_item            # double-buffered input columns
               + 2 * four_out * c_item      # double-buffered output columns
               + 4 * four_out * 4)          # live f32 temps (y, scale, shift, pre-cast)
    tn_cap = max(128, (max(budget - fixed, 0) // per_col) // 128 * 128)

    # ---- token-tile width: lane-dense (multiple of 128) + >=8 grid steps -----
    if tn is None:
        target_steps = 8                                  # >=4 steps per v7x TensorCore
        tiles_wanted = max(1, -(-target_steps // B))
        tn = min(tn_cap, _round_up(-(-HW // tiles_wanted), 128))
    else:
        tn = min(max(128, (tn // 128) * 128), tn_cap)
    if tn >= HW or HW <= 128:
        tn = HW                                           # single full-width tile
    num_tiles = pl.cdiv(HW, tn)    # ragged last tile (if any) is masked by Pallas

    vmem_need = fixed + tn * per_col
    vmem_limit = int(min(max(2 * vmem_need, 32 * 1024 * 1024), 3 * phys // 4))

    kernel = functools.partial(_patch_expand_kernel, eps=eps)

    y = pl.pallas_call(
        kernel,
        out_shape=jax.ShapeDtypeStruct((B, four_out, HW), cdt),
        grid_spec=pltpu.PrefetchScalarGridSpec(
            num_scalar_prefetch=0,
            grid=(B, num_tiles),
            in_specs=[
                pl.BlockSpec((1, C_in, tn), lambda b, t: (b, 0, t)),
                # grid-invariant parameters: constant index_map -> DMA'd once
                pl.BlockSpec((four_out, C_in), lambda b, t: (0, 0)),
                pl.BlockSpec((4, four_out), lambda b, t: (0, 0)),
                pl.BlockSpec((four_out, 4), lambda b, t: (0, 0)),
                pl.BlockSpec((four_out, 1), lambda b, t: (0, 0)),
            ],
            out_specs=pl.BlockSpec((1, four_out, tn), lambda b, t: (b, 0, t)),
        ),
        compiler_params=pltpu.CompilerParams(
            dimension_semantics=("parallel", "parallel"),
            vmem_limit_bytes=vmem_limit),
    )(x_r, wt, seg, segt_g, beta_col)

    # The single remaining layout shuffle, fused with the output dtype cast:
    #   'b (p1 p2 c) (h w) -> b c (h p1) (w p2)'
    y = y.reshape(B, 2, 2, out_dim, H, W_sp)
    y = jnp.transpose(y, (0, 3, 4, 1, 5, 2)).astype(out_dtype)   # (B, c, H, p1, W, p2)
    return y.reshape(B, out_dim, 2 * H, 2 * W_sp)


def _reference(x, w, gamma, beta, eps=1e-5):
    """Pure-JAX f32 reference mirroring the PyTorch forward."""
    B, C_in, H, W = x.shape
    out_dim = w.shape[1] // 4
    xt = jnp.transpose(x, (0, 2, 3, 1)).reshape(B, H * W, C_in)
    y = xt @ w                                          # (B, H*W, 4*out_dim)
    y = y.reshape(B, H, W, 2, 2, out_dim)
    y = jnp.transpose(y, (0, 1, 3, 2, 4, 5)).reshape(B, 2 * H, 2 * W, out_dim)
    mean = jnp.mean(y, axis=-1, keepdims=True)
    var = jnp.mean(jnp.square(y - mean), axis=-1, keepdims=True)
    y = (y - mean) * jax.lax.rsqrt(var + eps) * gamma + beta
    return jnp.transpose(y, (0, 3, 1, 2))


if __name__ == "__main__":
    key = jax.random.PRNGKey(0)
    B, in_chan, H, W = 2, 16, 8, 8
    out_dim = 8                      # dim_scale = 2  -> LayerNorm(out_dim)

    kx, kw, kg, kb = jax.random.split(key, 4)
    x = jax.random.normal(kx, (B, in_chan, H, W), dtype=jnp.float32)
    # nn.Linear(in_chan, 4*out_dim, bias=False) weight, stored transposed as
    # (in_chan, 4*out_dim); the wrapper flips it back to the PyTorch layout.
    w = jax.random.normal(kw, (in_chan, 4 * out_dim), dtype=jnp.float32) * 0.1
    gamma = 1.0 + 0.1 * jax.random.normal(kg, (out_dim,), dtype=jnp.float32)
    beta = 0.1 * jax.random.normal(kb, (out_dim,), dtype=jnp.float32)

    ref = _reference(x, w, gamma, beta)

    # 1) exact-math path (f32 everywhere) — tight correctness check.
    out_f32 = jax.block_until_ready(
        patch_expand(x, w, gamma, beta, compute_dtype=jnp.float32))
    assert out_f32.shape == (B, out_dim, 2 * H, 2 * W), out_f32.shape
    err32 = float(jnp.max(jnp.abs(out_f32 - ref)))
    assert err32 < 1e-4, err32

    # 2) fast path (default): bf16 MXU inputs / bf16 intermediate layout, f32
    #    accumulate + LN statistics — loose check against the f32 reference.
    out_bf16 = jax.block_until_ready(patch_expand(x, w, gamma, beta))
    assert out_bf16.shape == (B, out_dim, 2 * H, 2 * W), out_bf16.shape
    assert out_bf16.dtype == x.dtype
    max_err = float(jnp.max(jnp.abs(out_bf16.astype(jnp.float32) - ref)))
    assert max_err < 0.2, max_err

    print("KERNEL_OK")
</pallas_src>

<mosaic_0001>
module attributes {stable_mosaic.version = 11 : i64} {
  func.func @_patch_expand_kernel(%arg0: i32, %arg1: i32, %arg2: memref<1x16x64xf32, #tpu.memory_space<vmem>>, %arg3: memref<32x16xf32, #tpu.memory_space<vmem>>, %arg4: memref<4x32xf32, #tpu.memory_space<vmem>>, %arg5: memref<32x4xf32, #tpu.memory_space<vmem>>, %arg6: memref<32x1xf32, #tpu.memory_space<vmem>>, %arg7: memref<1x32x64xf32, #tpu.memory_space<vmem>>) attributes {dimension_semantics = [#tpu.dimension_semantics<parallel>, #tpu.dimension_semantics<parallel>], iteration_bounds = array<i64: 2, 1>, scalar_prefetch = 0 : i64, scratch_operands = 0 : i64, tpu.core_type = #tpu.core_type<tc>, window_params = [{transform_indices = @transform_0, window_bounds = array<i64: 1, 16, 64>}, {pipeline_mode = #tpu.pipeline_mode<synchronous>, transform_indices = @transform_1, window_bounds = array<i64: 32, 16>}, {pipeline_mode = #tpu.pipeline_mode<synchronous>, transform_indices = @transform_2, window_bounds = array<i64: 4, 32>}, {pipeline_mode = #tpu.pipeline_mode<synchronous>, transform_indices = @transform_3, window_bounds = array<i64: 32, 4>}, {pipeline_mode = #tpu.pipeline_mode<synchronous>, transform_indices = @transform_4, window_bounds = array<i64: 32, 1>}, {transform_indices = @transform_5, window_bounds = array<i64: 1, 32, 64>}]} {
    %c0 = arith.constant 0 : index
    %c0_0 = arith.constant 0 : index
    %c0_1 = arith.constant 0 : index
    %0 = vector.load %arg2[%c0, %c0_0, %c0_1] : memref<1x16x64xf32, #tpu.memory_space<vmem>>, vector<1x16x64xf32>
    %1 = vector.shape_cast %0 : vector<1x16x64xf32> to vector<16x64xf32>
    %c0_2 = arith.constant 0 : index
    %c0_3 = arith.constant 0 : index
    %2 = vector.load %arg3[%c0_2, %c0_3] : memref<32x16xf32, #tpu.memory_space<vmem>>, vector<32x16xf32>
    %cst = arith.constant dense<0.000000e+00> : vector<32x64xf32>
    %3 = tpu.matmul %2, %1, %cst {dimension_numbers = #tpu.dot_dimension_numbers<[1], [0], [0], [1], [0, 0, 1, 1], [], []>} : vector<32x16xf32>, vector<16x64xf32>, vector<32x64xf32> -> vector<32x64xf32>
    %c0_4 = arith.constant 0 : index
    %c0_5 = arith.constant 0 : index
    %4 = vector.load %arg4[%c0_4, %c0_5] : memref<4x32xf32, #tpu.memory_space<vmem>>, vector<4x32xf32>
    %cst_6 = arith.constant dense<0.000000e+00> : vector<4x64xf32>
    %5 = tpu.matmul %4, %3, %cst_6 {dimension_numbers = #tpu.dot_dimension_numbers<[1], [0], [0], [1], [0, 0, 1, 1], [], []>} : vector<4x32xf32>, vector<32x64xf32>, vector<4x64xf32> -> vector<4x64xf32>
    %c0_7 = arith.constant 0 : index
    %c0_8 = arith.constant 0 : index
    %6 = vector.load %arg4[%c0_7, %c0_8] : memref<4x32xf32, #tpu.memory_space<vmem>>, vector<4x32xf32>
    %7 = arith.mulf %3, %3 : vector<32x64xf32>
    %cst_9 = arith.constant dense<0.000000e+00> : vector<4x64xf32>
    %8 = tpu.matmul %6, %7, %cst_9 {dimension_numbers = #tpu.dot_dimension_numbers<[1], [0], [0], [1], [0, 0, 1, 1], [], []>} : vector<4x32xf32>, vector<32x64xf32>, vector<4x64xf32> -> vector<4x64xf32>
    %9 = arith.mulf %5, %5 : vector<4x64xf32>
    %10 = arith.subf %8, %9 : vector<4x64xf32>
    %cst_10 = arith.constant 0.000000e+00 : f32
    %11 = vector.broadcast %cst_10 : f32 to vector<4x64xf32>
    %12 = arith.maximumf %10, %11 : vector<4x64xf32>
    %cst_11 = arith.constant 9.99999974E-6 : f32
    %13 = vector.broadcast %cst_11 : f32 to vector<4x64xf32>
    %14 = arith.addf %12, %13 : vector<4x64xf32>
    %15 = math.rsqrt %14 : vector<4x64xf32>
    %c0_12 = arith.constant 0 : index
    %c0_13 = arith.constant 0 : index
    %16 = vector.load %arg5[%c0_12, %c0_13] : memref<32x4xf32, #tpu.memory_space<vmem>>, vector<32x4xf32>
    %cst_14 = arith.constant dense<0.000000e+00> : vector<32x64xf32>
    %17 = tpu.matmul %16, %15, %cst_14 {dimension_numbers = #tpu.dot_dimension_numbers<[1], [0], [0], [1], [0, 0, 1, 1], [], []>} : vector<32x4xf32>, vector<4x64xf32>, vector<32x64xf32> -> vector<32x64xf32>
    %c0_15 = arith.constant 0 : index
    %c0_16 = arith.constant 0 : index
    %18 = vector.load %arg6[%c0_15, %c0_16] : memref<32x1xf32, #tpu.memory_space<vmem>>, vector<32x1xf32>
    %c0_17 = arith.constant 0 : index
    %c0_18 = arith.constant 0 : index
    %19 = vector.load %arg5[%c0_17, %c0_18] : memref<32x4xf32, #tpu.memory_space<vmem>>, vector<32x4xf32>
    %20 = arith.mulf %5, %15 : vector<4x64xf32>
    %cst_19 = arith.constant dense<0.000000e+00> : vector<32x64xf32>
    %21 = tpu.matmul %19, %20, %cst_19 {dimension_numbers = #tpu.dot_dimension_numbers<[1], [0], [0], [1], [0, 0, 1, 1], [], []>} : vector<32x4xf32>, vector<4x64xf32>, vector<32x64xf32> -> vector<32x64xf32>
    %22 = vector.broadcast %18 : vector<32x1xf32> to vector<32x64xf32>
    %23 = arith.subf %22, %21 : vector<32x64xf32>
    %24 = arith.mulf %3, %17 : vector<32x64xf32>
    %25 = arith.addf %24, %23 : vector<32x64xf32>
    %c0_20 = arith.constant 0 : index
    %c0_21 = arith.constant 0 : index
    %c0_22 = arith.constant 0 : index
    %26 = vector.load %arg7[%c0_20, %c0_21, %c0_22] : memref<1x32x64xf32, #tpu.memory_space<vmem>>, vector<1x32x64xf32>
    %27 = vector.shape_cast %26 : vector<1x32x64xf32> to vector<32x64xf32>
    %28 = vector.shape_cast %25 : vector<32x64xf32> to vector<1x32x64xf32>
    tpu.vector_store %arg7[%c0_20, %c0_21, %c0_22], %28 {strides = array<i32>} : memref<1x32x64xf32, #tpu.memory_space<vmem>>, vector<1x32x64xf32>,
    return
  }
  func.func @transform_0(%arg0: i32, %arg1: i32) -> (i32, i32, i32) {
    %c0_i32 = arith.constant 0 : i32
    %c0_i32_0 = arith.constant 0 : i32
    return %arg0, %c0_i32, %arg1 : i32, i32, i32
  }
  func.func @transform_1(%arg0: i32, %arg1: i32) -> (i32, i32) {
    %c0_i32 = arith.constant 0 : i32
    %c0_i32_0 = arith.constant 0 : i32
    %c0_i32_1 = arith.constant 0 : i32
    return %c0_i32, %c0_i32_0 : i32, i32
  }
  func.func @transform_2(%arg0: i32, %arg1: i32) -> (i32, i32) {
    %c0_i32 = arith.constant 0 : i32
    %c0_i32_0 = arith.constant 0 : i32
    %c0_i32_1 = arith.constant 0 : i32
    return %c0_i32, %c0_i32_0 : i32, i32
  }
  func.func @transform_3(%arg0: i32, %arg1: i32) -> (i32, i32) {
    %c0_i32 = arith.constant 0 : i32
    %c0_i32_0 = arith.constant 0 : i32
    %c0_i32_1 = arith.constant 0 : i32
    return %c0_i32, %c0_i32_0 : i32, i32
  }
  func.func @transform_4(%arg0: i32, %arg1: i32) -> (i32, i32) {
    %c0_i32 = arith.constant 0 : i32
    %c0_i32_0 = arith.constant 0 : i32
    %c0_i32_1 = arith.constant 0 : i32
    return %c0_i32, %c0_i32_0 : i32, i32
  }
  func.func @transform_5(%arg0: i32, %arg1: i32) -> (i32, i32, i32) {
    %c0_i32 = arith.constant 0 : i32
    %c0_i32_0 = arith.constant 0 : i32
    return %arg0, %c0_i32, %arg1 : i32, i32, i32
  }
}

</mosaic_0001>

<llo_original>
// kernel: tpu_custom_call.1
$region0: #{tpu_custom_call.1}
  #allocation0 [shape = 'u32[]', space=smem, size = 0x4, offset = 0x4, fixed_abs, tag = 'smem constant byte address 0x4 - core index']
  #allocation1 [shape = 'u32[144,128]{1,0:T(1,128)}', space=vmem, size = 0x12000, scoped, tag = 'internal scratch']
  %s0 = inlined_call_operand.vmem [shape: f32[2,16,64], index: 0, kind: input, shape index: {}]
  %s1 = inlined_call_operand.vmem [shape: f32[32,16], index: 1, kind: input, shape index: {}]
  %s2 = inlined_call_operand.vmem [shape: f32[4,32], index: 2, kind: input, shape index: {}]
  %s3 = inlined_call_operand.vmem [shape: f32[32,4], index: 3, kind: input, shape index: {}]
  %s4 = inlined_call_operand.vmem [shape: f32[32,1], index: 4, kind: input, shape index: {}]
  %s5 = inlined_call_operand.hbm [shape: f32[2,32,64], index: 5, kind: output, shape index: {}]
  %s6 = sld [smem:[#allocation0]]
  $region53: #{tpu_custom_call.1} parent=0
    _
  %s8 = ssub.s32 1, %s6
  %s9 = scalar_select 0, %s8, %s6
  $region1: #{tpu_custom_call.1} parent=0
    #allocation2 [shape = 'u8[32768]{0}', space=vmem, size = 0x8000, scoped, tag = 'output window, operand 0']
    #allocation3 [shape = 's32[2]{0}', space=sflag, size = 0x8, scoped, tag = 'scoped memory for tpu_custom_call.1']
    %10 = vsyncpa [#allocation3], 0
    %s11 = scalar_lea.sflag [#allocation3], 1
    %12 = vsyncpa %s11, 0
    loop: start=0, step=1, limit=4
    $region2: #{tpu_custom_call.1} parent=1 // loop_pre_header
      _
    $region3: #{tpu_custom_call.1} parent=1 // loop_header
      %s14 = sphi 0, %s18
      %p15 = scmp.ge.s32.totalorder %s14, 4
      %s21 = sphi 0, %s33
      %s22 = sphi 0, %s29
      %s23 = sphi 0, %s21
      %s24 = sphi 0, %s22
      %s25 = sphi 0, %s23
      %s26 = sphi 0, %s24
      %s38 = sphi 0, %s40
      %s41 = sphi 0, %s38
      %s42 = sphi 0, %s41
      %s58 = sphi 0, %s42
      %s62 = sphi 0, %s62
      %s64 = sphi 0, %s62
      %s65 = sphi 0, %s64
      %s79 = sphi 0, %s65
      %s83 = sphi 0, %s83
      %s85 = sphi 0, %s83
      %s86 = sphi 0, %s85
      %s100 = sphi 0, %s86
      %s104 = sphi 0, %s104
      %s106 = sphi 0, %s104
      %s107 = sphi 0, %s106
      %s121 = sphi 0, %s107
      %s125 = sphi 0, %s125
      %s127 = sphi 0, %s125
      %s128 = sphi 0, %s127
      %s142 = sphi 0, %s128
      %s150 = sphi 0, %s152
      %s153 = sphi 0, %s150
      %s154 = sphi 0, %s153
      %s170 = sphi 0, %s154
    $region4: #{tpu_custom_call.1} parent=1 // loop_header_branch
      %17 = sbr.rel (%p15) target = $region8
    $region5: #{tpu_custom_call.1} parent=1 // loop_body
      %s19 = ssub.s32 %s14, 1
      %s20 = ssub.s32 %s14, 2
      %s27 = sadd.s32 1, %s22
      %p28 = scmp.ge.s32.totalorder %s27, 1
      %s29 = scalar_select %p28, 0, %s27
      %s30 = sadd.s32 1, %s21
      %s31 = scalar_select %p28, %s30, %s21
      %p32 = scmp.ge.s32.totalorder %s31, 2
      %s33 = scalar_select %p32, 0, %s31
      %s34 = ssub.s32 %s21, %s33
      %s35 = ssub.s32 %s22, %s29
      %s36 = sor.u32 %s34, %s35
      %p37 = scmp.eq.s32.totalorder %s36, 0
      %s39 = sadd.s32 %s38, 1
      %s40 = scalar_select %p37, %s38, %s39
      %p43 = pneg %p37
      %p44 = scmp.eq.s32.totalorder %s14, 1
      %p45 = por %p43, %p44
      %p46 = scmp.ne.s32.totalorder %s38, %s41
      %p47 = scmp.eq.s32.totalorder %s14, 0
      %p48 = por %p46, %p47
      %p49 = scmp.ne.s32.totalorder %s38, %s41
      %p50 = scmp.eq.s32.totalorder %s19, 1
      %p51 = por %p49, %p50
      %p52 = scmp.ne.s32.totalorder %s41, %s42
      %p53 = scmp.eq.s32.totalorder %s19, 0
      %p54 = por %p52, %p53
      %p55 = scmp.ne.s32.totalorder %s41, %s42
      %p56 = scmp.eq.s32.totalorder %s20, 1
      %p57 = por %p55, %p56
      %p59 = scmp.ne.s32.totalorder %s42, %s58
      %p60 = scmp.eq.s32.totalorder %s20, 0
      %p61 = por %p59, %p60
      %s63 = sadd.s32 %s62, 1
      %p66 = scmp.eq.s32.totalorder %s14, 1
      %p67 = scmp.ne.s32.totalorder %s62, %s64
      %p68 = scmp.eq.s32.totalorder %s14, 0
      %p69 = por %p67, %p68
      %p70 = scmp.ne.s32.totalorder %s62, %s64
      %p71 = scmp.eq.s32.totalorder %s19, 1
      %p72 = por %p70, %p71
      %p73 = scmp.ne.s32.totalorder %s64, %s65
      %p74 = scmp.eq.s32.totalorder %s19, 0
      %p75 = por %p73, %p74
      %p76 = scmp.ne.s32.totalorder %s64, %s65
      %p77 = scmp.eq.s32.totalorder %s20, 1
      %p78 = por %p76, %p77
      %p80 = scmp.ne.s32.totalorder %s65, %s79
      %p81 = scmp.eq.s32.totalorder %s20, 0
      %p82 = por %p80, %p81
      %s84 = sadd.s32 %s83, 1
      %p87 = scmp.eq.s32.totalorder %s14, 1
      %p88 = scmp.ne.s32.totalorder %s83, %s85
      %p89 = scmp.eq.s32.totalorder %s14, 0
      %p90 = por %p88, %p89
      %p91 = scmp.ne.s32.totalorder %s83, %s85
      %p92 = scmp.eq.s32.totalorder %s19, 1
      %p93 = por %p91, %p92
      %p94 = scmp.ne.s32.totalorder %s85, %s86
      %p95 = scmp.eq.s32.totalorder %s19, 0
      %p96 = por %p94, %p95
      %p97 = scmp.ne.s32.totalorder %s85, %s86
      %p98 = scmp.eq.s32.totalorder %s20, 1
      %p99 = por %p97, %p98
      %p101 = scmp.ne.s32.totalorder %s86, %s100
      %p102 = scmp.eq.s32.totalorder %s20, 0
      %p103 = por %p101, %p102
      %s105 = sadd.s32 %s104, 1
      %p108 = scmp.eq.s32.totalorder %s14, 1
      %p109 = scmp.ne.s32.totalorder %s104, %s106
      %p110 = scmp.eq.s32.totalorder %s14, 0
      %p111 = por %p109, %p110
      %p112 = scmp.ne.s32.totalorder %s104, %s106
      %p113 = scmp.eq.s32.totalorder %s19, 1
      %p114 = por %p112, %p113
      %p115 = scmp.ne.s32.totalorder %s106, %s107
      %p116 = scmp.eq.s32.totalorder %s19, 0
      %p117 = por %p115, %p116
      %p118 = scmp.ne.s32.totalorder %s106, %s107
      %p119 = scmp.eq.s32.totalorder %s20, 1
      %p120 = por %p118, %p119
      %p122 = scmp.ne.s32.totalorder %s107, %s121
      %p123 = scmp.eq.s32.totalorder %s20, 0
      %p124 = por %p122, %p123
      %s126 = sadd.s32 %s125, 1
      %p129 = scmp.eq.s32.totalorder %s14, 1
      %p130 = scmp.ne.s32.totalorder %s125, %s127
      %p131 = scmp.eq.s32.totalorder %s14, 0
      %p132 = por %p130, %p131
      %p133 = scmp.ne.s32.totalorder %s125, %s127
      %p134 = scmp.eq.s32.totalorder %s19, 1
      %p135 = por %p133, %p134
      %p136 = scmp.ne.s32.totalorder %s127, %s128
      %p137 = scmp.eq.s32.totalorder %s19, 0
      %p138 = por %p136, %p137
      %p139 = scmp.ne.s32.totalorder %s127, %s128
      %p140 = scmp.eq.s32.totalorder %s20, 1
      %p141 = por %p139, %p140
      %p143 = scmp.ne.s32.totalorder %s128, %s142
      %p144 = scmp.eq.s32.totalorder %s20, 0
      %p145 = por %p143, %p144
      %s146 = ssub.s32 %s21, %s33
      %s147 = ssub.s32 %s22, %s29
      %s148 = sor.u32 %s146, %s147
      %p149 = scmp.eq.s32.totalorder %s148, 0
      %s151 = sadd.s32 %s150, 1
      %s152 = scalar_select %p149, %s150, %s151
      %p155 = pneg %p149
      %p156 = scmp.eq.s32.totalorder %s14, 1
      %p157 = por %p155, %p156
      %p158 = scmp.ne.s32.totalorder %s150, %s153
      %p159 = scmp.eq.s32.totalorder %s14, 0
      %p160 = por %p158, %p159
      %p161 = scmp.ne.s32.totalorder %s150, %s153
      %p162 = scmp.eq.s32.totalorder %s19, 1
      %p163 = por %p161, %p162
      %p164 = scmp.ne.s32.totalorder %s153, %s154
      %p165 = scmp.eq.s32.totalorder %s19, 0
      %p166 = por %p164, %p165
      %p167 = scmp.ne.s32.totalorder %s153, %s154
      %p168 = scmp.eq.s32.totalorder %s20, 1
      %p169 = por %p167, %p168
      %p171 = scmp.ne.s32.totalorder %s154, %s170
      %p172 = scmp.eq.s32.totalorder %s20, 0
      %p173 = por %p171, %p172
      %p174 = scmp.le.s32.totalorder 1, %s14
      %p175 = scmp.lt.s32.totalorder %s14, 3
      %p176 = pnand %p174, %p175
      %p177 = pneg %p176
      // Predicated region
      $region9: #{tpu_custom_call.1} parent=5 // pred_check
        _
      $region10: #{tpu_custom_call.1} parent=5 // pred_check_branch
        %179 = sbr.rel (%p176) target = $region12
      $region11: #{tpu_custom_call.1} parent=5 // pred_region
        %s180 = ssub.s32 %s14, 1
        // Predicated region
        $region13: #{tpu_custom_call.1} parent=11 // pred_check
          %p181 = pneg %p75
        $region14: #{tpu_custom_call.1} parent=11 // pred_check_branch
          %183 = sbr.rel (%p181) target = $region16
        $region15: #{tpu_custom_call.1} parent=11 // pred_region
          _
        $region16: #{tpu_custom_call.1} parent=11 // pred_fallthru
          _
        // Predicated region
        $region17: #{tpu_custom_call.1} parent=11 // pred_check
          %p184 = pneg %p96
        $region18: #{tpu_custom_call.1} parent=11 // pred_check_branch
          %186 = sbr.rel (%p184) target = $region20
        $region19: #{tpu_custom_call.1} parent=11 // pred_region
          _
        $region20: #{tpu_custom_call.1} parent=11 // pred_fallthru
          _
        // Predicated region
        $region21: #{tpu_custom_call.1} parent=11 // pred_check
          %p187 = pneg %p117
        $region22: #{tpu_custom_call.1} parent=11 // pred_check_branch
          %189 = sbr.rel (%p187) target = $region24
        $region23: #{tpu_custom_call.1} parent=11 // pred_region
          _
        $region24: #{tpu_custom_call.1} parent=11 // pred_fallthru
          _
        // Predicated region
        $region25: #{tpu_custom_call.1} parent=11 // pred_check
          %p190 = pneg %p138
        $region26: #{tpu_custom_call.1} parent=11 // pred_check_branch
          %192 = sbr.rel (%p190) target = $region28
        $region27: #{tpu_custom_call.1} parent=11 // pred_region
          _
        $region28: #{tpu_custom_call.1} parent=11 // pred_fallthru
          _
      $region12: #{tpu_custom_call.1} parent=5 // pred_fallthru
        _
      %p193 = scmp.lt.s32.totalorder %s14, 2
      // Predicated region
      $region29: #{tpu_custom_call.1} parent=5 // pred_check
        %p194 = pneg %p193
      $region30: #{tpu_custom_call.1} parent=5 // pred_check_branch
        %196 = sbr.rel (%p194) target = $region32
      $region31: #{tpu_custom_call.1} parent=5 // pred_region
        // Predicated region
        $region33: #{tpu_custom_call.1} parent=31 // pred_check
          %p197 = pneg %p48
        $region34: #{tpu_custom_call.1} parent=31 // pred_check_branch
          %199 = sbr.rel (%p197) target = $region36
        $region35: #{tpu_custom_call.1} parent=31 // pred_region
          %p200 = scmp.lt.s32.totalorder %s21, 1
          %s201 = scalar_select %p200, %s21, 1
          %p202 = scmp.lt.s32.totalorder %s22, 0
          %s203 = scalar_select %p202, %s22, 0
          %s204 = smul.addr %s201, 2
          %s205 = sadd.s32 %s203, %s204
          %s206 = smul.addr %s205, 8
          %s207 = scalar_lea.vmem %s0, %s206
        $region36: #{tpu_custom_call.1} parent=31 // pred_fallthru
          _
      $region32: #{tpu_custom_call.1} parent=5 // pred_fallthru
        _
      %p208 = scmp.le.s32.totalorder 1, %s14
      %p209 = scmp.lt.s32.totalorder %s14, 3
      %p210 = pnand %p208, %p209
      %p211 = pneg %p210
      // Predicated region
      $region37: #{tpu_custom_call.1} parent=5 // pred_check
        _
      $region38: #{tpu_custom_call.1} parent=5 // pred_check_branch
        %213 = sbr.rel (%p210) target = $region40
      $region39: #{tpu_custom_call.1} parent=5 // pred_region
        %s214 = ssub.s32 %s14, 1
        %p215 = scmp.lt.s32.totalorder %s23, 1
        %s216 = scalar_select %p215, %s23, 1
        %p217 = scmp.lt.s32.totalorder %s24, 0
        %s218 = scalar_select %p217, %s24, 0
        %s219 = smul.addr %s216, 2
        %s220 = sadd.s32 %s218, %s219
        %s221 = smul.addr %s220, 8
        %s222 = scalar_lea.vmem %s0, %s221
        %p223 = pneg %p54
        %p224 = pneg %p51
        %p225 = pneg %p75
        %p226 = pneg %p72
        %p227 = pneg %p96
        %p228 = pneg %p93
        %p229 = pneg %p117
        %p230 = pneg %p114
        %p231 = pneg %p138
        %p232 = pneg %p135
        %p233 = pneg %p166
        %p234 = pneg %p163
        %s235 = sand.u32 %s153, 1
        %s236 = scalar_lea.sflag [#allocation3], %s235
        %s237 = sand.u32 %s153, 1
        %s238 = smul.addr %s237, 32
        %s239 = scalar_lea.vmem [#allocation2], %s238
        %p240 = scmp.lt.s32.totalorder %s23, 1
        %s241 = scalar_select %p240, %s23, 1
        %p242 = scmp.lt.s32.totalorder %s24, 0
        %s243 = scalar_select %p242, %s24, 0
        %s244 = smul.addr %s241, 2
        %s245 = sadd.s32 %s243, %s244
        %s246 = smul.addr %s245, 8
        %s247 = scalar_lea.vmem %s0, %s246
        %v248 = vld [vmem:[%s247] sm:$0xff]
        %v249 = vld [vmem:[%s247 + $0x8] sm:$0xff]
        %v250 = vld [vmem:[%s1] sm:$0xff]
        %v251 = vld [vmem:[%s1 + $0x8] sm:$0xff]
        %v252 = vld [vmem:[%s1 + $0x10] sm:$0xff]
        %v253 = vld [vmem:[%s1 + $0x18] sm:$0xff]
        %vm254 = vcmask 130048
        %v256 = vsel %vm254, %v250, 0
        %v259 = vsel %vm254, %v251, 0
        %v262 = vsel %vm254, %v252, 0
        %v265 = vsel %vm254, %v253, 0
        %267 = vmatprep.subr.mxu0 0.0
        %268 = vmatpush1.msra.mxu0 %v248
        %269 = vmatprep.subr.mxu0 0.0
        %270 = vmatpush1.msra.mxu0 %v249
        %271 = vmatprep.subr.mxu0 0.0
        %272 = vmatpush1.msra.mxu0 0.0
        %273 = vmatprep.subr.mxu0 0.0
        %274 = vmatpush1.msra.mxu0 0.0
        %275 = vmatprep.subr.mxu0 0.0
        %276 = vmatpush1.msra.mxu0 0.0
        %277 = vmatprep.subr.mxu0 0.0
        %278 = vmatpush1.msra.mxu0 0.0
        %279 = vmatprep.subr.mxu0 0.0
        %280 = vmatpush1.msra.mxu0 0.0
        %281 = vmatprep.subr.mxu0 0.0
        %282 = vmatpush1.msra.mxu0 0.0
        %283 = vmatprep.subr.mxu0 0.0
        %284 = vmatpush1.msra.mxu0 0.0
        %285 = vmatprep.subr.mxu0 0.0
        %286 = vmatpush1.msra.mxu0 0.0
        %287 = vmatprep.subr.mxu0 0.0
        %288 = vmatpush1.msra.mxu0 0.0
        %289 = vmatprep.subr.mxu0 0.0
        %290 = vmatpush1.msra.mxu0 0.0
        %291 = vmatprep.subr.mxu0 0.0
        %292 = vmatpush1.msra.mxu0 0.0
        %293 = vmatprep.subr.mxu0 0.0
        %294 = vmatpush1.msra.mxu0 0.0
        %295 = vmatprep.subr.mxu0 0.0
        %296 = vmatpush1.msra.mxu0 0.0
        %297 = vmatprep.subr.mxu0 0.0
        %298 = vmatpush1.msra.mxu0 0.0
        %299 = vmatprep.subr.mxu0 0.0
        %300 = vmatpush1.msra.mxu0 0.0
        %301 = vmatprep.subr.mxu0 0.0
        %302 = vmatpush1.msra.mxu0 0.0
        %303 = vmatprep.subr.mxu0 0.0
        %304 = vmatpush1.msra.mxu0 0.0
        %305 = vmatprep.subr.mxu0 0.0
        %306 = vmatpush1.msra.mxu0 0.0
        %307 = vmatprep.subr.mxu0 0.0
        %308 = vmatpush1.msra.mxu0 0.0
        %309 = vmatprep.subr.mxu0 0.0
        %310 = vmatpush1.msra.mxu0 0.0
        %311 = vmatprep.subr.mxu0 0.0
        %312 = vmatpush1.msra.mxu0 0.0
        %313 = vmatprep.subr.mxu0 0.0
        %314 = vmatpush1.msra.mxu0 0.0
        %315 = vmatprep.subr.mxu0 0.0
        %316 = vmatpush1.msra.mxu0 0.0
        %317 = vmatprep.subr.mxu0 0.0
        %318 = vmatpush1.msra.mxu0 0.0
        %319 = vmatprep.subr.mxu0 0.0
        %320 = vmatpush1.msra.mxu0 0.0
        %321 = vmatprep.subr.mxu0 0.0
        %322 = vmatpush1.msra.mxu0 0.0
        %323 = vmatprep.subr.mxu0 0.0
        %324 = vmatpush1.msra.mxu0 0.0
        %325 = vmatprep.subr.mxu0 0.0
        %326 = vmatpush1.msra.mxu0 0.0
        %327 = vmatprep.subr.mxu0 0.0
        %328 = vmatpush1.msra.mxu0 0.0
        %329 = vmatprep.subr.mxu0 0.0
        %330 = vmatpush1.msra.mxu0 0.0
        %331 = vmatprep.mubr.f32.mxu0 0.0
        %332 = vmatmul.mubr.f32.gmra.mrb[0].mxu0 %v256
        %v333 = vpop.f32.mrb[0].mxu0
        %v334 = vadd.f32 0.0, %v333
        %v335 = vpop.f32.mrb[0].mxu0
        %336 = vmatprep.mubr.f32.mxu0 0.0
        %337 = vmatmul.mubr.f32.gmra.mrb[0].mxu0 %v259
        %v338 = vpop.f32.mrb[0].mxu0
        %v339 = vadd.f32 0.0, %v338
        %v340 = vpop.f32.mrb[0].mxu0
        %341 = vmatprep.mubr.f32.mxu0 0.0
        %342 = vmatmul.mubr.f32.gmra.mrb[0].mxu0 %v262
        %v343 = vpop.f32.mrb[0].mxu0
        %v344 = vadd.f32 0.0, %v343
        %v345 = vpop.f32.mrb[0].mxu0
        %346 = vmatprep.mubr.f32.mxu0 0.0
        %347 = vmatmul.mubr.f32.gmra.mrb[0].mxu0 %v265
        %v348 = vpop.f32.mrb[0].mxu0
        %v349 = vadd.f32 0.0, %v348
        %v350 = vpop.f32.mrb[0].mxu0
        %351 = vdwg.mxu0
        %v352 = vld [vmem:[%s2] sm:$0xf]
        %vm353 = vcmask 261120
        %v355 = vsel %vm353, %v352, 0
        %357 = vmatprep.subr.mxu0 0.0
        %358 = vmatpush1.msra.mxu0 %v334
        %359 = vmatprep.subr.mxu0 0.0
        %360 = vmatpush1.msra.mxu0 %v339
        %361 = vmatprep.subr.mxu0 0.0
        %362 = vmatpush1.msra.mxu0 %v344
        %363 = vmatprep.subr.mxu0 0.0
        %364 = vmatpush1.msra.mxu0 %v349
        %365 = vmatprep.subr.mxu0 0.0
        %366 = vmatpush1.msra.mxu0 0.0
        %367 = vmatprep.subr.mxu0 0.0
        %368 = vmatpush1.msra.mxu0 0.0
        %369 = vmatprep.subr.mxu0 0.0
        %370 = vmatpush1.msra.mxu0 0.0
        %371 = vmatprep.subr.mxu0 0.0
        %372 = vmatpush1.msra.mxu0 0.0
        %373 = vmatprep.subr.mxu0 0.0
        %374 = vmatpush1.msra.mxu0 0.0
        %375 = vmatprep.subr.mxu0 0.0
        %376 = vmatpush1.msra.mxu0 0.0
        %377 = vmatprep.subr.mxu0 0.0
        %378 = vmatpush1.msra.mxu0 0.0
        %379 = vmatprep.subr.mxu0 0.0
        %380 = vmatpush1.msra.mxu0 0.0
        %381 = vmatprep.subr.mxu0 0.0
        %382 = vmatpush1.msra.mxu0 0.0
        %383 = vmatprep.subr.mxu0 0.0
        %384 = vmatpush1.msra.mxu0 0.0
        %385 = vmatprep.subr.mxu0 0.0
        %386 = vmatpush1.msra.mxu0 0.0
        %387 = vmatprep.subr.mxu0 0.0
        %388 = vmatpush1.msra.mxu0 0.0
        %389 = vmatprep.subr.mxu0 0.0
        %390 = vmatpush1.msra.mxu0 0.0
        %391 = vmatprep.subr.mxu0 0.0
        %392 = vmatpush1.msra.mxu0 0.0
        %393 = vmatprep.subr.mxu0 0.0
        %394 = vmatpush1.msra.mxu0 0.0
        %395 = vmatprep.subr.mxu0 0.0
        %396 = vmatpush1.msra.mxu0 0.0
        %397 = vmatprep.subr.mxu0 0.0
        %398 = vmatpush1.msra.mxu0 0.0
        %399 = vmatprep.subr.mxu0 0.0
        %400 = vmatpush1.msra.mxu0 0.0
        %401 = vmatprep.subr.mxu0 0.0
        %402 = vmatpush1.msra.mxu0 0.0
        %403 = vmatprep.subr.mxu0 0.0
        %404 = vmatpush1.msra.mxu0 0.0
        %405 = vmatprep.subr.mxu0 0.0
        %406 = vmatpush1.msra.mxu0 0.0
        %407 = vmatprep.subr.mxu0 0.0
        %408 = vmatpush1.msra.mxu0 0.0
        %409 = vmatprep.subr.mxu0 0.0
        %410 = vmatpush1.msra.mxu0 0.0
        %411 = vmatprep.subr.mxu0 0.0
        %412 = vmatpush1.msra.mxu0 0.0
        %413 = vmatprep.subr.mxu0 0.0
        %414 = vmatpush1.msra.mxu0 0.0
        %415 = vmatprep.subr.mxu0 0.0
        %416 = vmatpush1.msra.mxu0 0.0
        %417 = vmatprep.subr.mxu0 0.0
        %418 = vmatpush1.msra.mxu0 0.0
        %419 = vmatprep.subr.mxu0 0.0
        %420 = vmatpush1.msra.mxu0 0.0
        %421 = vmatprep.mubr.f32.mxu0 0.0
        %422 = vmatmul.mubr.f32.gmra.mrb[0].mxu0 %v355
        %v423 = vpop.f32.mrb[0].mxu0
        %v424 = vadd.f32 0.0, %v423
        %v425 = vpop.f32.mrb[0].mxu0
        %426 = vdwg.mxu0
        %v427 = vmul.f32 %v334, %v334
        %v428 = vmul.f32 %v339, %v339
        %v429 = vmul.f32 %v344, %v344
        %v430 = vmul.f32 %v349, %v349
        %431 = vmatprep.subr.mxu0 0.0
        %432 = vmatpush1.msra.mxu0 %v427
        %433 = vmatprep.subr.mxu0 0.0
        %434 = vmatpush1.msra.mxu0 %v428
        %435 = vmatprep.subr.mxu0 0.0
        %436 = vmatpush1.msra.mxu0 %v429
        %437 = vmatprep.subr.mxu0 0.0
        %438 = vmatpush1.msra.mxu0 %v430
        %439 = vmatprep.subr.mxu0 0.0
        %440 = vmatpush1.msra.mxu0 0.0
        %441 = vmatprep.subr.mxu0 0.0
        %442 = vmatpush1.msra.mxu0 0.0
        %443 = vmatprep.subr.mxu0 0.0
        %444 = vmatpush1.msra.mxu0 0.0
        %445 = vmatprep.subr.mxu0 0.0
        %446 = vmatpush1.msra.mxu0 0.0
        %447 = vmatprep.subr.mxu0 0.0
        %448 = vmatpush1.msra.mxu0 0.0
        %449 = vmatprep.subr.mxu0 0.0
        %450 = vmatpush1.msra.mxu0 0.0
        %451 = vmatprep.subr.mxu0 0.0
        %452 = vmatpush1.msra.mxu0 0.0
        %453 = vmatprep.subr.mxu0 0.0
        %454 = vmatpush1.msra.mxu0 0.0
        %455 = vmatprep.subr.mxu0 0.0
        %456 = vmatpush1.msra.mxu0 0.0
        %457 = vmatprep.subr.mxu0 0.0
        %458 = vmatpush1.msra.mxu0 0.0
        %459 = vmatprep.subr.mxu0 0.0
        %460 = vmatpush1.msra.mxu0 0.0
        %461 = vmatprep.subr.mxu0 0.0
        %462 = vmatpush1.msra.mxu0 0.0
        %463 = vmatprep.subr.mxu0 0.0
        %464 = vmatpush1.msra.mxu0 0.0
        %465 = vmatprep.subr.mxu0 0.0
        %466 = vmatpush1.msra.mxu0 0.0
        %467 = vmatprep.subr.mxu0 0.0
        %468 = vmatpush1.msra.mxu0 0.0
        %469 = vmatprep.subr.mxu0 0.0
        %470 = vmatpush1.msra.mxu0 0.0
        %471 = vmatprep.subr.mxu0 0.0
        %472 = vmatpush1.msra.mxu0 0.0
        %473 = vmatprep.subr.mxu0 0.0
        %474 = vmatpush1.msra.mxu0 0.0
        %475 = vmatprep.subr.mxu0 0.0
        %476 = vmatpush1.msra.mxu0 0.0
        %477 = vmatprep.subr.mxu0 0.0
        %478 = vmatpush1.msra.mxu0 0.0
        %479 = vmatprep.subr.mxu0 0.0
        %480 = vmatpush1.msra.mxu0 0.0
        %481 = vmatprep.subr.mxu0 0.0
        %482 = vmatpush1.msra.mxu0 0.0
        %483 = vmatprep.subr.mxu0 0.0
        %484 = vmatpush1.msra.mxu0 0.0
        %485 = vmatprep.subr.mxu0 0.0
        %486 = vmatpush1.msra.mxu0 0.0
        %487 = vmatprep.subr.mxu0 0.0
        %488 = vmatpush1.msra.mxu0 0.0
        %489 = vmatprep.subr.mxu0 0.0
        %490 = vmatpush1.msra.mxu0 0.0
        %491 = vmatprep.subr.mxu0 0.0
        %492 = vmatpush1.msra.mxu0 0.0
        %493 = vmatprep.subr.mxu0 0.0
        %494 = vmatpush1.msra.mxu0 0.0
        %495 = vmatprep.mubr.f32.mxu0 0.0
        %496 = vmatmul.mubr.f32.gmra.mrb[0].mxu0 %v355
        %v497 = vpop.f32.mrb[0].mxu0
        %v498 = vadd.f32 0.0, %v497
        %v499 = vpop.f32.mrb[0].mxu0
        %500 = vdwg.mxu0
        %v501 = vmul.f32 %v424, %v424
        %v502 = vsub.f32 %v498, %v501
        %v503 = vmax.f32 %v502, 0.0
        %v504 = vadd.f32 %v503, 1e-05
        %v505 = vrsqrt.pop %v504
        %v506 = vld [vmem:[%s3] sm:$0xff]
        %v507 = vld [vmem:[%s3 + $0x8] sm:$0xff]
        %v508 = vld [vmem:[%s3 + $0x10] sm:$0xff]
        %v509 = vld [vmem:[%s3 + $0x18] sm:$0xff]
        %vm510 = vcmask 31744
        %v512 = vsel %vm510, %v506, 0
        %v515 = vsel %vm510, %v507, 0
        %v518 = vsel %vm510, %v508, 0
        %v521 = vsel %vm510, %v509, 0
        %vm523 = vcmask 1043456
        %v525 = vsel %vm523, %v505, 0
        %527 = vmatprep.subr.mxu0 0.0
        %528 = vmatpush1.msra.mxu0 %v525
        %529 = vmatprep.subr.mxu0 0.0
        %530 = vmatpush1.msra.mxu0 0.0
        %531 = vmatprep.subr.mxu0 0.0
        %532 = vmatpush1.msra.mxu0 0.0
        %533 = vmatprep.subr.mxu0 0.0
        %534 = vmatpush1.msra.mxu0 0.0
        %535 = vmatprep.subr.mxu0 0.0
        %536 = vmatpush1.msra.mxu0 0.0
        %537 = vmatprep.subr.mxu0 0.0
        %538 = vmatpush1.msra.mxu0 0.0
        %539 = vmatprep.subr.mxu0 0.0
        %540 = vmatpush1.msra.mxu0 0.0
        %541 = vmatprep.subr.mxu0 0.0
        %542 = vmatpush1.msra.mxu0 0.0
        %543 = vmatprep.subr.mxu0 0.0
        %544 = vmatpush1.msra.mxu0 0.0
        %545 = vmatprep.subr.mxu0 0.0
        %546 = vmatpush1.msra.mxu0 0.0
        %547 = vmatprep.subr.mxu0 0.0
        %548 = vmatpush1.msra.mxu0 0.0
        %549 = vmatprep.subr.mxu0 0.0
        %550 = vmatpush1.msra.mxu0 0.0
        %551 = vmatprep.subr.mxu0 0.0
        %552 = vmatpush1.msra.mxu0 0.0
        %553 = vmatprep.subr.mxu0 0.0
        %554 = vmatpush1.msra.mxu0 0.0
        %555 = vmatprep.subr.mxu0 0.0
        %556 = vmatpush1.msra.mxu0 0.0
        %557 = vmatprep.subr.mxu0 0.0
        %558 = vmatpush1.msra.mxu0 0.0
        %559 = vmatprep.subr.mxu0 0.0
        %560 = vmatpush1.msra.mxu0 0.0
        %561 = vmatprep.subr.mxu0 0.0
        %562 = vmatpush1.msra.mxu0 0.0
        %563 = vmatprep.subr.mxu0 0.0
        %564 = vmatpush1.msra.mxu0 0.0
        %565 = vmatprep.subr.mxu0 0.0
        %566 = vmatpush1.msra.mxu0 0.0
        %567 = vmatprep.subr.mxu0 0.0
        %568 = vmatpush1.msra.mxu0 0.0
        %569 = vmatprep.subr.mxu0 0.0
        %570 = vmatpush1.msra.mxu0 0.0
        %571 = vmatprep.subr.mxu0 0.0
        %572 = vmatpush1.msra.mxu0 0.0
        %573 = vmatprep.subr.mxu0 0.0
        %574 = vmatpush1.msra.mxu0 0.0
        %575 = vmatprep.subr.mxu0 0.0
        %576 = vmatpush1.msra.mxu0 0.0
        %577 = vmatprep.subr.mxu0 0.0
        %578 = vmatpush1.msra.mxu0 0.0
        %579 = vmatprep.subr.mxu0 0.0
        %580 = vmatpush1.msra.mxu0 0.0
        %581 = vmatprep.subr.mxu0 0.0
        %582 = vmatpush1.msra.mxu0 0.0
        %583 = vmatprep.subr.mxu0 0.0
        %584 = vmatpush1.msra.mxu0 0.0
        %585 = vmatprep.subr.mxu0 0.0
        %586 = vmatpush1.msra.mxu0 0.0
        %587 = vmatprep.subr.mxu0 0.0
        %588 = vmatpush1.msra.mxu0 0.0
        %589 = vmatprep.subr.mxu0 0.0
        %590 = vmatpush1.msra.mxu0 0.0
        %591 = vmatprep.mubr.f32.mxu0 0.0
        %592 = vmatmul.mubr.f32.gmra.mrb[0].mxu0 %v512
        %v593 = vpop.f32.mrb[0].mxu0
        %v594 = vadd.f32 0.0, %v593
        %v595 = vpop.f32.mrb[0].mxu0
        %596 = vmatprep.mubr.f32.mxu0 0.0
        %597 = vmatmul.mubr.f32.gmra.mrb[0].mxu0 %v515
        %v598 = vpop.f32.mrb[0].mxu0
        %v599 = vadd.f32 0.0, %v598
        %v600 = vpop.f32.mrb[0].mxu0
        %601 = vmatprep.mubr.f32.mxu0 0.0
        %602 = vmatmul.mubr.f32.gmra.mrb[0].mxu0 %v518
        %v603 = vpop.f32.mrb[0].mxu0
        %v604 = vadd.f32 0.0, %v603
        %v605 = vpop.f32.mrb[0].mxu0
        %606 = vmatprep.mubr.f32.mxu0 0.0
        %607 = vmatmul.mubr.f32.gmra.mrb[0].mxu0 %v521
        %v608 = vpop.f32.mrb[0].mxu0
        %v609 = vadd.f32 0.0, %v608
        %v610 = vpop.f32.mrb[0].mxu0
        %611 = vdwg.mxu0
        %v612 = vld [vmem:[%s4] sm:$0xff]
        %v613 = vld [vmem:[%s4 + $0x8] sm:$0xff]
        %v614 = vld [vmem:[%s4 + $0x10] sm:$0xff]
        %v615 = vld [vmem:[%s4 + $0x18] sm:$0xff]
        %v616 = vmul.f32 %v424, %v505
        %v618 = vsel %vm523, %v616, 0
        %620 = vmatprep.subr.mxu0 0.0
        %621 = vmatpush1.msra.mxu0 %v618
        %622 = vmatprep.subr.mxu0 0.0
        %623 = vmatpush1.msra.mxu0 0.0
        %624 = vmatprep.subr.mxu0 0.0
        %625 = vmatpush1.msra.mxu0 0.0
        %626 = vmatprep.subr.mxu0 0.0
        %627 = vmatpush1.msra.mxu0 0.0
        %628 = vmatprep.subr.mxu0 0.0
        %629 = vmatpush1.msra.mxu0 0.0
        %630 = vmatprep.subr.mxu0 0.0
        %631 = vmatpush1.msra.mxu0 0.0
        %632 = vmatprep.subr.mxu0 0.0
        %633 = vmatpush1.msra.mxu0 0.0
        %634 = vmatprep.subr.mxu0 0.0
        %635 = vmatpush1.msra.mxu0 0.0
        %636 = vmatprep.subr.mxu0 0.0
        %637 = vmatpush1.msra.mxu0 0.0
        %638 = vmatprep.subr.mxu0 0.0
        %639 = vmatpush1.msra.mxu0 0.0
        %640 = vmatprep.subr.mxu0 0.0
        %641 = vmatpush1.msra.mxu0 0.0
        %642 = vmatprep.subr.mxu0 0.0
        %643 = vmatpush1.msra.mxu0 0.0
        %644 = vmatprep.subr.mxu0 0.0
        %645 = vmatpush1.msra.mxu0 0.0
        %646 = vmatprep.subr.mxu0 0.0
        %647 = vmatpush1.msra.mxu0 0.0
        %648 = vmatprep.subr.mxu0 0.0
        %649 = vmatpush1.msra.mxu0 0.0
        %650 = vmatprep.subr.mxu0 0.0
        %651 = vmatpush1.msra.mxu0 0.0
        %652 = vmatprep.subr.mxu0 0.0
        %653 = vmatpush1.msra.mxu0 0.0
        %654 = vmatprep.subr.mxu0 0.0
        %655 = vmatpush1.msra.mxu0 0.0
        %656 = vmatprep.subr.mxu0 0.0
        %657 = vmatpush1.msra.mxu0 0.0
        %658 = vmatprep.subr.mxu0 0.0
        %659 = vmatpush1.msra.mxu0 0.0
        %660 = vmatprep.subr.mxu0 0.0
        %661 = vmatpush1.msra.mxu0 0.0
        %662 = vmatprep.subr.mxu0 0.0
        %663 = vmatpush1.msra.mxu0 0.0
        %664 = vmatprep.subr.mxu0 0.0
        %665 = vmatpush1.msra.mxu0 0.0
        %666 = vmatprep.subr.mxu0 0.0
        %667 = vmatpush1.msra.mxu0 0.0
        %668 = vmatprep.subr.mxu0 0.0
        %669 = vmatpush1.msra.mxu0 0.0
        %670 = vmatprep.subr.mxu0 0.0
        %671 = vmatpush1.msra.mxu0 0.0
        %672 = vmatprep.subr.mxu0 0.0
        %673 = vmatpush1.msra.mxu0 0.0
        %674 = vmatprep.subr.mxu0 0.0
        %675 = vmatpush1.msra.mxu0 0.0
        %676 = vmatprep.subr.mxu0 0.0
        %677 = vmatpush1.msra.mxu0 0.0
        %678 = vmatprep.subr.mxu0 0.0
        %679 = vmatpush1.msra.mxu0 0.0
        %680 = vmatprep.subr.mxu0 0.0
        %681 = vmatpush1.msra.mxu0 0.0
        %682 = vmatprep.subr.mxu0 0.0
        %683 = vmatpush1.msra.mxu0 0.0
        %684 = vmatprep.mubr.f32.mxu0 0.0
        %685 = vmatmul.mubr.f32.gmra.mrb[0].mxu0 %v512
        %v686 = vpop.f32.mrb[0].mxu0
        %v687 = vadd.f32 0.0, %v686
        %v688 = vpop.f32.mrb[0].mxu0
        %689 = vmatprep.mubr.f32.mxu0 0.0
        %690 = vmatmul.mubr.f32.gmra.mrb[0].mxu0 %v515
        %v691 = vpop.f32.mrb[0].mxu0
        %v692 = vadd.f32 0.0, %v691
        %v693 = vpop.f32.mrb[0].mxu0
        %694 = vmatprep.mubr.f32.mxu0 0.0
        %695 = vmatmul.mubr.f32.gmra.mrb[0].mxu0 %v518
        %v696 = vpop.f32.mrb[0].mxu0
        %v697 = vadd.f32 0.0, %v696
        %v698 = vpop.f32.mrb[0].mxu0
        %699 = vmatprep.mubr.f32.mxu0 0.0
        %700 = vmatmul.mubr.f32.gmra.mrb[0].mxu0 %v521
        %v701 = vpop.f32.mrb[0].mxu0
        %v702 = vadd.f32 0.0, %v701
        %v703 = vpop.f32.mrb[0].mxu0
        %704 = vdwg.mxu0
        %706 = vset.pattern.permute.xlu0 0
        %707 = vperm.xlu0 %706, %v612
        %v708 = vpop.permute.xlu0 %707
        %711 = vset.pattern.permute.xlu0 0
        %712 = vperm.xlu0 %711, %v613
        %v713 = vpop.permute.xlu0 %712
        %716 = vset.pattern.permute.xlu0 0
        %717 = vperm.xlu0 %716, %v614
        %v718 = vpop.permute.xlu0 %717
        %721 = vset.pattern.permute.xlu0 0
        %722 = vperm.xlu0 %721, %v615
        %v723 = vpop.permute.xlu0 %722
        %v725 = vsub.f32 %v708, %v687
        %v726 = vsub.f32 %v713, %v692
        %v727 = vsub.f32 %v718, %v697
        %v728 = vsub.f32 %v723, %v702
        %v729 = vmul.f32 %v334, %v594
        %v730 = vmul.f32 %v339, %v599
        %v731 = vmul.f32 %v344, %v604
        %v732 = vmul.f32 %v349, %v609
        %v733 = vadd.f32 %v729, %v725
        %v734 = vadd.f32 %v730, %v726
        %v735 = vadd.f32 %v731, %v727
        %v736 = vadd.f32 %v732, %v728
        %vm737 = vcmask 523264
        %738 = vst.msk [vmem:[%s239] sm:$0xff] %vm737, %v733
        %739 = vst.msk [vmem:[%s239 + $0x8] sm:$0xff] %vm737, %v734
        %740 = vst.msk [vmem:[%s239 + $0x10] sm:$0xff] %vm737, %v735
        %741 = vst.msk [vmem:[%s239 + $0x18] sm:$0xff] %vm737, %v736
        %s742 = sand.u32 %s153, 1
        %s743 = scalar_lea.sflag [#allocation3], %s742
        %s744 = sand.u32 %s153, 1
        %s745 = smul.addr %s744, 32
        %s746 = scalar_lea.vmem [#allocation2], %s745
        // Predicated region
        $region41: #{tpu_custom_call.1} parent=39 // pred_check
          %p747 = pneg %p163
        $region42: #{tpu_custom_call.1} parent=39 // pred_check_branch
          %749 = sbr.rel (%p747) target = $region44
        $region43: #{tpu_custom_call.1} parent=39 // pred_region
          %s751 = ssub.s32 512, 512
          %752 = vsyncadd %s743, %s751
          %s753 = smul.addr %s23, 4
          %s754 = sadd.s32 %s24, %s753
          %s755 = smul.addr %s754, 128
          %s756 = scalar_lea.hbm %s5, %s755
          %s757 = sshll.u32 %s746, 4
          %s758 = int_to_ptr.vmem [resolvable:$true] %s757
          %763 = dma.vmem_to_hbm [thread:$0]  %s758, 512, %s756, %s743, 128, 128, 8
        $region44: #{tpu_custom_call.1} parent=39 // pred_fallthru
          _
      $region40: #{tpu_custom_call.1} parent=5 // pred_fallthru
        _
      %p764 = scmp.le.s32.totalorder 2, %s14
      // Predicated region
      $region45: #{tpu_custom_call.1} parent=5 // pred_check
        %p765 = pneg %p764
      $region46: #{tpu_custom_call.1} parent=5 // pred_check_branch
        %767 = sbr.rel (%p765) target = $region48
      $region47: #{tpu_custom_call.1} parent=5 // pred_region
        %s768 = ssub.s32 %s14, 2
        // Predicated region
        $region49: #{tpu_custom_call.1} parent=47 // pred_check
          %p769 = pneg %p169
        $region50: #{tpu_custom_call.1} parent=47 // pred_check_branch
          %771 = sbr.rel (%p769) target = $region52
        $region51: #{tpu_custom_call.1} parent=47 // pred_region
          %s772 = sand.u32 %s154, 1
          %s773 = scalar_lea.sflag [#allocation3], %s772
          %s774 = sand.u32 %s154, 1
          %s775 = smul.addr %s774, 32
          %s776 = scalar_lea.vmem [#allocation2], %s775
          %777 = dma.done %s773, 512
        $region52: #{tpu_custom_call.1} parent=47 // pred_fallthru
          _
      $region48: #{tpu_custom_call.1} parent=5 // pred_fallthru
        _
    $region6: #{tpu_custom_call.1} parent=1 // loop_footer
      %s18 = sadd.s32 1, %s14
    $region7: #{tpu_custom_call.1} parent=1 // loop_footer_branch
      %13 = sbr.rel target = $region3
    $region8: #{tpu_custom_call.1} parent=1 // loop_exit
      _
    %778 = vsyncpa [#allocation3], 1
    %s779 = scalar_lea.sflag [#allocation3], 1
    %780 = vsyncpa %s779, 1

</llo_original>
